<compile_context>
chip_gen: v5e
topology: v5e:2x2
jax: 0.10.0
libtpu: 0.0.40
codegen_flags: <defaults>
</compile_context>

<pallas_src>
import jax
import jax.numpy as jnp
from jax.experimental import pallas as pl
from jax.experimental.pallas import tpu as pltpu

LANE = 128

# ---------------------------------------------------------------------------
# Standalone SiLU (x * sigmoid(x)) — memory-bound elementwise kernel.
# Prefer fusing SiLU into its producer kernel (see the conv epilogue below);
# use this only for stages with no Pallas producer.
# ---------------------------------------------------------------------------

_SILU_MAX_ROWS = 2048               # (2048, 512) f32 = 4 MiB/tile, 16 MiB dbl-buffered
_SILU_LANE_CHOICES = (512, 256, 128)


def _silu_kernel(x_ref, o_ref):
    # Always compute in f32 (free while HBM-bound; exact for bf16 inputs too).
    x = x_ref[...].astype(jnp.float32)
    o_ref[...] = (x * jax.nn.sigmoid(x)).astype(o_ref.dtype)


def _silu_2d(x2d):
    n_rows, lanes = x2d.shape
    block_rows = n_rows if n_rows <= _SILU_MAX_ROWS else _SILU_MAX_ROWS
    grid = (pl.cdiv(n_rows, block_rows),)
    return pl.pallas_call(
        _silu_kernel,
        out_shape=jax.ShapeDtypeStruct(x2d.shape, x2d.dtype),
        grid_spec=pltpu.PrefetchScalarGridSpec(
            num_scalar_prefetch=0,
            grid=grid,
            in_specs=[pl.BlockSpec((block_rows, lanes), lambda i: (i, 0))],
            out_specs=pl.BlockSpec((block_rows, lanes), lambda i: (i, 0)),
        ),
        compiler_params=pltpu.CompilerParams(
            dimension_semantics=("parallel",),
            vmem_limit_bytes=48 * 1024 * 1024,
        ),
    )(x2d)


def _silu_jnp(v):
    v32 = v.astype(jnp.float32)
    return (v32 * jax.nn.sigmoid(v32)).astype(v.dtype)


def silu(x: jnp.ndarray) -> jnp.ndarray:
    """Elementwise SiLU on an arbitrary-shaped (e.g. NCHW/NHWC) tensor via Pallas."""
    orig_shape = x.shape
    flat = x.reshape(-1)
    n = flat.shape[0]

    if n < LANE:                    # tiny tensor: not worth a kernel launch
        return _silu_jnp(flat).reshape(orig_shape)

    # No full-tensor pad/slice: run the 128-aligned prefix through Pallas and
    # handle the (<128-element) tail with plain jnp.
    n_main = (n // LANE) * LANE
    lanes = next(l for l in _SILU_LANE_CHOICES if n_main % l == 0)
    main2d = flat[:n_main].reshape(n_main // lanes, lanes)
    out_main = _silu_2d(main2d).reshape(-1)

    if n_main == n:
        return out_main.reshape(orig_shape)
    tail = _silu_jnp(flat[n_main:])
    return jnp.concatenate([out_main, tail]).reshape(orig_shape)


# ---------------------------------------------------------------------------
# Fused 1x1 Conv (no bias) + BatchNorm (eval-mode affine) + SiLU.
# This is the ConvBNSiLU(kernel=1) stage of ReXNetV2, with BN scale folded into
# the weights and the SiLU applied as an f32 epilogue on the MXU accumulator.
# Primary path is channels-last (NHWC): no activation transposes.
# ---------------------------------------------------------------------------

_MM_BM = 512     # rows of pixels per MXU tile
_MM_BN = 512     # output channels per MXU tile (bounds VMEM for C_out up to 1280)


def _conv1x1_bn_silu_kernel(x_ref, w_ref, shift_ref, o_ref):
    # x_ref: (bm, C_in) bf16, w_ref: (C_in, bn) bf16 (BN scale pre-folded),
    # shift_ref: (1, bn) f32.  f32 accumulation on the MXU.
    acc = jnp.dot(x_ref[...], w_ref[...], preferred_element_type=jnp.float32)
    y = acc + shift_ref[...]                                  # folded BatchNorm shift
    o_ref[...] = (y * jax.nn.sigmoid(y)).astype(o_ref.dtype)  # SiLU epilogue (f32)


def conv1x1_bn_silu_nhwc(x, w, gamma, beta, mean, var, eps=1e-5):
    """x: NHWC, w: (C_out, C_in, 1, 1). Returns NHWC. Preferred (no transposes)."""
    N, H, W_sp, C_in = x.shape
    C_out = w.shape[0]
    out_dtype = x.dtype

    # Fold BN into per-channel scale/shift; fold the scale into the weights
    # (O(C_in*C_out) work at weight-prep time).
    scale = gamma.astype(jnp.float32) * jax.lax.rsqrt(var.astype(jnp.float32) + eps)
    shift = beta.astype(jnp.float32) - mean.astype(jnp.float32) * scale
    w2d = w.reshape(C_out, C_in).T.astype(jnp.float32) * scale[None, :]   # (C_in, C_out)

    # Lane-pad C_out (weights + shift only — cheap, weight-prep time).
    C_out_pad = ((C_out + LANE - 1) // LANE) * LANE
    if C_out_pad != C_out:
        w2d = jnp.pad(w2d, ((0, 0), (0, C_out_pad - C_out)))
        shift = jnp.pad(shift, (0, C_out_pad - C_out))

    # bf16 MXU inputs, f32 accumulation in-kernel.
    x2d = x.reshape(N * H * W_sp, C_in).astype(jnp.bfloat16)   # NHWC reshape is free
    w2d = w2d.astype(jnp.bfloat16)
    shift2d = shift.reshape(1, C_out_pad)

    M = x2d.shape[0]
    bm = M if M <= _MM_BM else _MM_BM
    bn = C_out_pad if C_out_pad <= _MM_BN else _MM_BN
    grid = (pl.cdiv(M, bm), pl.cdiv(C_out_pad, bn))

    out2d = pl.pallas_call(
        _conv1x1_bn_silu_kernel,
        out_shape=jax.ShapeDtypeStruct((M, C_out_pad), out_dtype),
        grid_spec=pltpu.PrefetchScalarGridSpec(
            num_scalar_prefetch=0,
            grid=grid,
            in_specs=[
                pl.BlockSpec((bm, C_in), lambda i, j: (i, 0)),
                pl.BlockSpec((C_in, bn), lambda i, j: (0, j)),
                pl.BlockSpec((1, bn), lambda i, j: (0, j)),
            ],
            out_specs=pl.BlockSpec((bm, bn), lambda i, j: (i, j)),
        ),
        compiler_params=pltpu.CompilerParams(
            dimension_semantics=("parallel", "parallel"),
            vmem_limit_bytes=48 * 1024 * 1024,
        ),
    )(x2d, w2d, shift2d)

    if C_out_pad != C_out:
        # TODO(synk): in a full NHWC pipeline keep channels lane-padded between stages
        # instead of slicing here.
        out2d = out2d[:, :C_out]
    return out2d.reshape(N, H, W_sp, C_out)


def conv1x1_bn_silu(x, w, gamma, beta, mean, var, eps=1e-5):
    """NCHW adapter for drop-in parity with the PyTorch module.
    Prefer conv1x1_bn_silu_nhwc and keep activations NHWC end-to-end."""
    x_nhwc = jnp.transpose(x, (0, 2, 3, 1))
    out = conv1x1_bn_silu_nhwc(x_nhwc, w, gamma, beta, mean, var, eps)
    return jnp.transpose(out, (0, 3, 1, 2))


# ---------------------------------------------------------------------------
# Self-test
# ---------------------------------------------------------------------------

if __name__ == "__main__":
    key = jax.random.PRNGKey(0)
    k1, k2, k3, k4, k5, k6, k7, k8 = jax.random.split(key, 8)

    # --- standalone SiLU (the SiLU modules of ReXNetV2), NCHW activations ----
    x = jax.random.normal(k1, (2, 4, 16, 16), dtype=jnp.float32)
    y = jax.block_until_ready(silu(x))
    y_ref = x * jax.nn.sigmoid(x)
    assert y.shape == x.shape and y.dtype == x.dtype
    assert jnp.max(jnp.abs(y - y_ref)) < 1e-6

    # odd-sized tensor exercises the aligned-prefix + jnp-tail path
    x_odd = jax.random.normal(k2, (2, 3, 7, 7), dtype=jnp.float32)
    y_odd = jax.block_until_ready(silu(x_odd))
    assert y_odd.shape == x_odd.shape
    assert jnp.max(jnp.abs(y_odd - x_odd * jax.nn.sigmoid(x_odd))) < 1e-6

    # --- fused 1x1 Conv + BN + SiLU (ConvBNSiLU with kernel=1) ---------------
    C_in, C_out = 4, 8
    w = jax.random.normal(k4, (C_out, C_in, 1, 1), dtype=jnp.float32) * 0.1
    gamma = 1.0 + 0.1 * jax.random.normal(k5, (C_out,), dtype=jnp.float32)
    beta = 0.1 * jax.random.normal(k6, (C_out,), dtype=jnp.float32)
    mean = 0.1 * jax.random.normal(k7, (C_out,), dtype=jnp.float32)
    var = jax.nn.softplus(jax.random.normal(k8, (C_out,), dtype=jnp.float32)) + 0.5

    scale = gamma * jax.lax.rsqrt(var + 1e-5)
    shift = beta - mean * scale

    # Primary NHWC path (no transposes).
    x_nhwc = jax.random.normal(k3, (2, 16, 16, C_in), dtype=jnp.float32)
    out_nhwc = jax.block_until_ready(
        conv1x1_bn_silu_nhwc(x_nhwc, w, gamma, beta, mean, var))
    conv_ref = jnp.einsum('nhwc,oc->nhwo', x_nhwc, w.reshape(C_out, C_in))
    bn_ref = conv_ref * scale.reshape(1, 1, 1, C_out) + shift.reshape(1, 1, 1, C_out)
    ref_nhwc = bn_ref * jax.nn.sigmoid(bn_ref)
    assert out_nhwc.shape == ref_nhwc.shape and out_nhwc.dtype == ref_nhwc.dtype
    # bf16 MXU inputs with f32 accumulation — documented tolerance.
    assert jnp.max(jnp.abs(out_nhwc - ref_nhwc)) < 2e-2

    # NCHW adapter (drop-in parity with the PyTorch module).
    xc = jnp.transpose(x_nhwc, (0, 3, 1, 2))
    out_nchw = jax.block_until_ready(conv1x1_bn_silu(xc, w, gamma, beta, mean, var))
    ref_nchw = jnp.transpose(ref_nhwc, (0, 3, 1, 2))
    assert out_nchw.shape == ref_nchw.shape
    assert jnp.max(jnp.abs(out_nchw - ref_nchw)) < 2e-2

    print("KERNEL_OK")
</pallas_src>

<mosaic_0001>
module attributes {stable_mosaic.version = 11 : i64} {
  func.func @_silu_kernel(%arg0: i32, %arg1: memref<4x512xf32, #tpu.memory_space<vmem>>, %arg2: memref<4x512xf32, #tpu.memory_space<vmem>>) attributes {dimension_semantics = [#tpu.dimension_semantics<parallel>], iteration_bounds = array<i64: 1>, scalar_prefetch = 0 : i64, scratch_operands = 0 : i64, tpu.core_type = #tpu.core_type<tc>, window_params = [{transform_indices = @transform_0, window_bounds = array<i64: 4, 512>}, {transform_indices = @transform_1, window_bounds = array<i64: 4, 512>}]} {
    %c0 = arith.constant 0 : index
    %c0_0 = arith.constant 0 : index
    %0 = vector.load %arg1[%c0, %c0_0] : memref<4x512xf32, #tpu.memory_space<vmem>>, vector<4x512xf32>
    %1 = arith.negf %0 : vector<4x512xf32>
    %2 = math.exp %1 : vector<4x512xf32>
    %cst = arith.constant 1.000000e+00 : f32
    %3 = vector.broadcast %cst : f32 to vector<4x512xf32>
    %4 = arith.addf %3, %2 : vector<4x512xf32>
    %5 = arith.divf %3, %4 : vector<4x512xf32>
    %6 = arith.mulf %0, %5 : vector<4x512xf32>
    %c0_1 = arith.constant 0 : index
    %c0_2 = arith.constant 0 : index
    %7 = vector.load %arg2[%c0_1, %c0_2] : memref<4x512xf32, #tpu.memory_space<vmem>>, vector<4x512xf32>
    tpu.vector_store %arg2[%c0_1, %c0_2], %6 {strides = array<i32>} : memref<4x512xf32, #tpu.memory_space<vmem>>, vector<4x512xf32>,
    return
  }
  func.func @transform_0(%arg0: i32) -> (i32, i32) {
    %c0_i32 = arith.constant 0 : i32
    %c0_i32_0 = arith.constant 0 : i32
    return %arg0, %c0_i32 : i32, i32
  }
  func.func @transform_1(%arg0: i32) -> (i32, i32) {
    %c0_i32 = arith.constant 0 : i32
    %c0_i32_0 = arith.constant 0 : i32
    return %arg0, %c0_i32 : i32, i32
  }
}

</mosaic_0001>

<llo_original>
// kernel: tpu_custom_call.1
$region0: #{tpu_custom_call.1}
  #allocation0 [shape = 'u32[]', space=smem, size = 0x4, offset = 0x4, fixed_abs, tag = 'smem constant byte address 0x4 - core index']
  #allocation1 [shape = 'u32[72,128]{1,0:T(1,128)}', space=vmem, size = 0x9000, scoped, tag = 'internal scratch']
  %s0 = inlined_call_operand.hbm [shape: f32[4,512], index: 0, kind: input, shape index: {}]
  %s1 = inlined_call_operand.hbm [shape: f32[4,512], index: 1, kind: output, shape index: {}]
  %s2 = sld [smem:[#allocation0]]
  $region18: #{tpu_custom_call.1} parent=0
    _
  %s4 = ssub.s32 1, %s2
  %s5 = scalar_select 0, %s4, %s2
  $region1: #{tpu_custom_call.1} parent=0
    #allocation2 [shape = 'u8[8192]{0}', space=vmem, size = 0x2000, scoped, tag = 'input window, operand 0, single buffered']
    #allocation3 [shape = 's32[1]{0}', space=sflag, size = 0x4, scoped, tag = 'scoped memory for tpu_custom_call.1']
    #allocation4 [shape = 's32[1]{0}', space=sflag, size = 0x4, scoped, tag = 'scoped memory for tpu_custom_call.1']
    #allocation5 [shape = 'u8[8192]{0}', space=vmem, size = 0x2000, scoped, tag = 'output window, operand 0, single buffered']
    %6 = vsyncpa [#allocation3], 0
    %7 = vsyncpa [#allocation4], 0
    // Predicated region
    $region2: #{tpu_custom_call.1} parent=1 // pred_check
      _
    $region3: #{tpu_custom_call.1} parent=1 // pred_check_branch
      %9 = sbr.rel (0) target = $region5
    $region4: #{tpu_custom_call.1} parent=1 // pred_region
      %11 = vsyncadd [#allocation3], 0
      %s13 = sshll.u32 %s0, 4
      %s14 = int_to_ptr.hbm [resolvable:$true] %s13
      %s15 = sshll.u32 [#allocation2], 4
      %s16 = int_to_ptr.vmem [resolvable:$true] %s15
      %18 = dma.hbm_to_vmem [thread:$0]  %s14, 256, %s16, [#allocation3]
    $region5: #{tpu_custom_call.1} parent=1 // pred_fallthru
      _
    // Predicated region
    $region6: #{tpu_custom_call.1} parent=1 // pred_check
      _
    $region7: #{tpu_custom_call.1} parent=1 // pred_check_branch
      %20 = sbr.rel (0) target = $region9
    $region8: #{tpu_custom_call.1} parent=1 // pred_region
      %22 = dma.done [#allocation3], 256
    $region9: #{tpu_custom_call.1} parent=1 // pred_fallthru
      _
    %v23 = vld [vmem:[#allocation2] sm:$0xff]
    %v24 = vld [vmem:[#allocation2 + $0x8] sm:$0xff]
    %v25 = vxor.u32 %v23, 2147483648
    %v26 = vxor.u32 %v24, 2147483648
    %v27 = vmul.f32 %v25, 1.442695
    %v28 = vpow.pop %v27
    %v29 = vmul.f32 %v26, 1.442695
    %v30 = vpow.pop %v29
    %v31 = vadd.f32 %v28, 1.0
    %v32 = vadd.f32 %v30, 1.0
    %v33 = vrcp.pop %v31
    %v34 = vmul.f32 %v31, %v33
    %v35 = vsub.f32 1.0, %v34
    %v36 = vmul.f32 %v33, %v35
    %v37 = vadd.f32 %v33, %v36
    %vm38 = vweird.f32 %v31
    %vm39 = vweird.f32 %v33
    %vm40 = vmor %vm38, %vm39
    %v41 = vsel %vm40, %v33, %v37
    %v42 = vand.u32 2147483647, %v31
    %vm43 = vcmp.eq.f32.partialorder %v42, 8.507059e+37
    %v44 = vand.u32 %v31, 2147483648
    %v45 = vor.u32 1.1754944e-38, %v44
    %v46 = vsel %vm43, %v45, %v41
    %v47 = vmul.f32 1.0, %v46
    %v48 = vrcp.pop %v32
    %v49 = vmul.f32 %v32, %v48
    %v50 = vsub.f32 1.0, %v49
    %v51 = vmul.f32 %v48, %v50
    %v52 = vadd.f32 %v48, %v51
    %vm53 = vweird.f32 %v32
    %vm54 = vweird.f32 %v48
    %vm55 = vmor %vm53, %vm54
    %v56 = vsel %vm55, %v48, %v52
    %v57 = vand.u32 2147483647, %v32
    %vm58 = vcmp.eq.f32.partialorder %v57, 8.507059e+37
    %v59 = vand.u32 %v32, 2147483648
    %v60 = vor.u32 1.1754944e-38, %v59
    %v61 = vsel %vm58, %v60, %v56
    %v62 = vmul.f32 1.0, %v61
    %v63 = vmul.f32 %v23, %v47
    %v64 = vmul.f32 %v24, %v62
    %65 = vst [vmem:[#allocation5] sm:$0xff] %v63
    %66 = vst [vmem:[#allocation5 + $0x8] sm:$0xff] %v64
    // Predicated region
    $region10: #{tpu_custom_call.1} parent=1 // pred_check
      _
    $region11: #{tpu_custom_call.1} parent=1 // pred_check_branch
      %68 = sbr.rel (0) target = $region13
    $region12: #{tpu_custom_call.1} parent=1 // pred_region
      %70 = vsyncadd [#allocation4], 0
      %s72 = sshll.u32 [#allocation5], 4
      %s73 = int_to_ptr.vmem [resolvable:$true] %s72
      %s74 = sshll.u32 %s1, 4
      %s75 = int_to_ptr.hbm [resolvable:$true] %s74
      %77 = dma.vmem_to_hbm [thread:$0]  %s73, 256, %s75, [#allocation4]
    $region13: #{tpu_custom_call.1} parent=1 // pred_fallthru
      _
    // Predicated region
    $region14: #{tpu_custom_call.1} parent=1 // pred_check
      _
    $region15: #{tpu_custom_call.1} parent=1 // pred_check_branch
      %79 = sbr.rel (0) target = $region17
    $region16: #{tpu_custom_call.1} parent=1 // pred_region
      %81 = dma.done [#allocation4], 256
    $region17: #{tpu_custom_call.1} parent=1 // pred_fallthru
      _
    %82 = vsyncpa [#allocation3], 1
    %83 = vsyncpa [#allocation4], 1

</llo_original>
